<compile_context>
chip_gen: v7x
topology: tpu7x:2x2x1
jax: 0.10.0
libtpu: 0.0.40
codegen_flags: <defaults>
</compile_context>

<pallas_src>
import jax
import jax.numpy as jnp
from jax import lax
from jax.experimental import pallas as pl
from jax.experimental.pallas import tpu as pltpu


def lstm_fc_kernel(x_ref, wih_ref, whh_ref, b_ref, wfc_ref, bfc_ref,
                   out_ref, xg_scr):
    """Full LSTM recurrence + final Linear, all resident in VMEM.

    x_ref  : (T*B, D)   flat time-major input (B already padded to a sublane multiple)
    wih_ref: (D, 4H)    input->gates weight (transposed; 'g' columns pre-scaled by 2)
    whh_ref: (H, 4H)    hidden->gates weight (transposed; 'g' columns pre-scaled by 2)
    b_ref  : (1, 4H)    fused bias b_ih + b_hh ('g' slice pre-scaled by 2)
    wfc_ref: (H, O_pad) fc weight (transposed, lane-padded)
    bfc_ref: (1, O_pad) fc bias (lane-padded)
    out_ref: (B, O_pad) output
    xg_scr : (T*B, 4H)  scratch holding the hoisted input projection
    """
    B = out_ref.shape[0]
    H = whh_ref.shape[0]
    T = x_ref.shape[0] // B

    # (1) Hoisted input projection: one big MXU matmul off the serial path.
    xg_scr[...] = (jnp.dot(x_ref[...], wih_ref[...],
                           preferred_element_type=jnp.float32)
                   + b_ref[...])

    whh = whh_ref[...]                       # loaded once, lives in vregs

    def step(t, carry):
        h, c = carry
        row = pl.multiple_of(t * B, 8)       # sublane-aligned slice of the projection
        gates = xg_scr[pl.ds(row, B), :] + jnp.dot(
            h, whh, preferred_element_type=jnp.float32)          # (B, 4H)
        # (2) One fused EUP pass over all four gates; tanh via 2*sigmoid(2z)-1.
        s = jax.nn.sigmoid(gates)
        i = s[:, 0 * H:1 * H]
        f = s[:, 1 * H:2 * H]
        g = 2.0 * s[:, 2 * H:3 * H] - 1.0
        o = s[:, 3 * H:4 * H]
        c_new = f * c + i * g
        h_new = o * jnp.tanh(c_new)
        return h_new, c_new

    h0 = jnp.zeros((B, H), jnp.float32)
    c0 = jnp.zeros((B, H), jnp.float32)
    # (3) Register-resident carry + full unroll of the short static recurrence.
    h_fin, _ = lax.fori_loop(0, T, step, (h0, c0), unroll=True)

    # fc(hidden[-1]) — lane-dense (B, O_pad) store.
    out_ref[...] = (jnp.dot(h_fin, wfc_ref[...],
                            preferred_element_type=jnp.float32)
                    + bfc_ref[...])


def lstm_model_forward(x, w_ih, w_hh, b_ih, b_hh, w_fc, b_fc):
    """x: (B, T, D) float32, PyTorch batch_first layout.  Returns (B, O)."""
    B, T, D = x.shape
    H = w_hh.shape[1]
    O = w_fc.shape[0]
    G = 4 * H

    # (4) Pad batch to a sublane multiple and fc output to a full lane width.
    B_pad = pl.cdiv(B, 8) * 8
    O_pad = pl.cdiv(O, 128) * 128

    # (2) Fold tanh(z) = 2*sigmoid(2z) - 1 into the parameters: scale 'g' columns by 2.
    gate_scale = jnp.ones((1, G), jnp.float32).at[:, 2 * H:3 * H].set(2.0)

    # Time-major, batch-padded, flattened to (T*B_pad, D): no in-kernel reshapes.
    x_tm = jnp.transpose(x, (1, 0, 2))                       # (T, B, D)
    x_tm = jnp.pad(x_tm, ((0, 0), (0, B_pad - B), (0, 0)))   # (T, B_pad, D)
    x_flat = x_tm.reshape(T * B_pad, D)

    wih_t = (w_ih.T * gate_scale).astype(jnp.float32)        # (D, 4H)
    whh_t = (w_hh.T * gate_scale).astype(jnp.float32)        # (H, 4H)
    bias = ((b_ih + b_hh).reshape(1, G) * gate_scale).astype(jnp.float32)
    wfc_t = jnp.zeros((H, O_pad), jnp.float32).at[:, :O].set(w_fc.T)
    bfc = jnp.zeros((1, O_pad), jnp.float32).at[:, :O].set(b_fc)

    flops = (2 * T * B_pad * D * G          # hoisted input projection
             + 2 * T * B_pad * H * G        # recurrent matmuls
             + 2 * B_pad * H * O_pad)       # final fc
    transcendentals = T * B_pad * (G + H)
    bytes_accessed = 4 * (T * B_pad * D + D * G + H * G + G
                          + H * O_pad + O_pad + B_pad * O_pad)

    vmem = lambda: pl.BlockSpec(memory_space=pltpu.VMEM)

    out = pl.pallas_call(
        lstm_fc_kernel,
        out_shape=jax.ShapeDtypeStruct((B_pad, O_pad), jnp.float32),
        in_specs=[vmem() for _ in range(6)],
        out_specs=vmem(),
        scratch_shapes=[pltpu.VMEM((T * B_pad, G), jnp.float32)],
        cost_estimate=pl.CostEstimate(flops=flops,
                                      transcendentals=transcendentals,
                                      bytes_accessed=bytes_accessed),
    )(x_flat, wih_t, whh_t, bias, wfc_t, bfc)

    # TODO(synk): for production T/B, stream the sequence via a time-chunked BlockSpec
    # grid (v7x has only 64 MiB VMEM), split batch across a "parallel" grid axis for
    # v7x's 2 TensorCores, and cast weights to bf16 on v6e/v7x (keep f32 h/c + accum).
    return out[:B, :O]


def _reference_forward(x, w_ih, w_hh, b_ih, b_hh, w_fc, b_fc):
    """Pure-JAX reference implementing torch.nn.LSTM + Linear semantics."""
    B, T, D = x.shape
    H = w_hh.shape[1]
    h = jnp.zeros((B, H), jnp.float32)
    c = jnp.zeros((B, H), jnp.float32)
    for t in range(T):
        gates = x[:, t, :] @ w_ih.T + b_ih + h @ w_hh.T + b_hh
        i = jax.nn.sigmoid(gates[:, 0 * H:1 * H])
        f = jax.nn.sigmoid(gates[:, 1 * H:2 * H])
        g = jnp.tanh(gates[:, 2 * H:3 * H])
        o = jax.nn.sigmoid(gates[:, 3 * H:4 * H])
        c = f * c + i * g
        h = o * jnp.tanh(c)
    return h @ w_fc.T + b_fc


if __name__ == "__main__":
    # Small shapes consistent with the module's forward.
    B, T, D, H, O = 2, 8, 16, 32, 4

    key = jax.random.PRNGKey(0)
    ks = jax.random.split(key, 7)
    scale = 1.0 / jnp.sqrt(H)   # matches PyTorch's uniform(-1/sqrt(H), 1/sqrt(H)) init

    x = jax.random.normal(ks[0], (B, T, D), jnp.float32)
    # LSTM parameters, gate order (i, f, g, o) as in PyTorch.
    w_ih = jax.random.uniform(ks[1], (4 * H, D), jnp.float32, -scale, scale)
    w_hh = jax.random.uniform(ks[2], (4 * H, H), jnp.float32, -scale, scale)
    b_ih = jax.random.uniform(ks[3], (4 * H,), jnp.float32, -scale, scale)
    b_hh = jax.random.uniform(ks[4], (4 * H,), jnp.float32, -scale, scale)
    # fc parameters.
    w_fc = jax.random.uniform(ks[5], (O, H), jnp.float32, -scale, scale)
    b_fc = jax.random.uniform(ks[6], (O,), jnp.float32, -scale, scale)

    out = lstm_model_forward(x, w_ih, w_hh, b_ih, b_hh, w_fc, b_fc)
    out = jax.block_until_ready(out)

    ref = _reference_forward(x, w_ih, w_hh, b_ih, b_hh, w_fc, b_fc)
    assert out.shape == (B, O)
    # Tolerance relaxed slightly vs 1e-5: tanh is computed as 2*sigmoid(2z)-1 in-kernel.
    assert jnp.allclose(out, ref, atol=1e-4, rtol=1e-4), "mismatch vs reference"

    print("KERNEL_OK")
</pallas_src>

<mosaic_0001>
module attributes {stable_mosaic.version = 11 : i64} {
  func.func @lstm_fc_kernel(%arg0: memref<64x16xf32, #tpu.memory_space<vmem>>, %arg1: memref<16x128xf32, #tpu.memory_space<vmem>>, %arg2: memref<32x128xf32, #tpu.memory_space<vmem>>, %arg3: memref<1x128xf32, #tpu.memory_space<vmem>>, %arg4: memref<32x128xf32, #tpu.memory_space<vmem>>, %arg5: memref<1x128xf32, #tpu.memory_space<vmem>>, %arg6: memref<8x128xf32, #tpu.memory_space<vmem>>, %arg7: memref<64x128xf32, #tpu.memory_space<vmem>>) attributes {dimension_semantics = [], scalar_prefetch = 0 : i64, scratch_operands = 1 : i64, tpu.core_type = #tpu.core_type<tc>} {
    %c0 = arith.constant 0 : index
    %c0_0 = arith.constant 0 : index
    %0 = vector.load %arg0[%c0, %c0_0] : memref<64x16xf32, #tpu.memory_space<vmem>>, vector<64x16xf32>
    %c0_1 = arith.constant 0 : index
    %c0_2 = arith.constant 0 : index
    %1 = vector.load %arg1[%c0_1, %c0_2] : memref<16x128xf32, #tpu.memory_space<vmem>>, vector<16x128xf32>
    %cst = arith.constant dense<0.000000e+00> : vector<64x128xf32>
    %2 = tpu.matmul %0, %1, %cst {dimension_numbers = #tpu.dot_dimension_numbers<[1], [0], [0], [1], [0, 0, 1, 1], [], []>} : vector<64x16xf32>, vector<16x128xf32>, vector<64x128xf32> -> vector<64x128xf32>
    %c0_3 = arith.constant 0 : index
    %c0_4 = arith.constant 0 : index
    %3 = vector.load %arg3[%c0_3, %c0_4] : memref<1x128xf32, #tpu.memory_space<vmem>>, vector<1x128xf32>
    %4 = vector.broadcast %3 : vector<1x128xf32> to vector<64x128xf32>
    %5 = arith.addf %2, %4 : vector<64x128xf32>
    %c0_5 = arith.constant 0 : index
    %c0_6 = arith.constant 0 : index
    %6 = vector.load %arg7[%c0_5, %c0_6] : memref<64x128xf32, #tpu.memory_space<vmem>>, vector<64x128xf32>
    tpu.vector_store %arg7[%c0_5, %c0_6], %5 {strides = array<i32>} : memref<64x128xf32, #tpu.memory_space<vmem>>, vector<64x128xf32>,
    %c0_7 = arith.constant 0 : index
    %c0_8 = arith.constant 0 : index
    %7 = vector.load %arg2[%c0_7, %c0_8] : memref<32x128xf32, #tpu.memory_space<vmem>>, vector<32x128xf32>
    %cst_9 = arith.constant 0.000000e+00 : f32
    %8 = vector.broadcast %cst_9 : f32 to vector<8x32xf32>
    %cst_10 = arith.constant 0.000000e+00 : f32
    %9 = vector.broadcast %cst_10 : f32 to vector<8x32xf32>
    %c0_i32 = arith.constant 0 : i32
    %c8_i32 = arith.constant 8 : i32
    %10 = arith.muli %c0_i32, %c8_i32 : i32
    %11 = tpu.assume_multiple %10, 8 : i32
    %12 = arith.index_cast %11 : i32 to index
    %c0_11 = arith.constant 0 : index
    %13 = vector.load %arg7[%12, %c0_11] : memref<64x128xf32, #tpu.memory_space<vmem>>, vector<8x128xf32>
    %cst_12 = arith.constant dense<0.000000e+00> : vector<8x128xf32>
    %14 = tpu.matmul %8, %7, %cst_12 {dimension_numbers = #tpu.dot_dimension_numbers<[1], [0], [0], [1], [0, 0, 1, 1], [], []>} : vector<8x32xf32>, vector<32x128xf32>, vector<8x128xf32> -> vector<8x128xf32>
    %15 = arith.addf %13, %14 : vector<8x128xf32>
    %16 = arith.negf %15 : vector<8x128xf32>
    %17 = math.exp %16 : vector<8x128xf32>
    %cst_13 = arith.constant 1.000000e+00 : f32
    %18 = vector.broadcast %cst_13 : f32 to vector<8x128xf32>
    %19 = arith.addf %18, %17 : vector<8x128xf32>
    %20 = arith.divf %18, %19 : vector<8x128xf32>
    %21 = vector.extract_strided_slice %20 {offsets = [0, 0], sizes = [8, 32], strides = [1, 1]} : vector<8x128xf32> to vector<8x32xf32>
    %22 = vector.extract_strided_slice %20 {offsets = [0, 32], sizes = [8, 32], strides = [1, 1]} : vector<8x128xf32> to vector<8x32xf32>
    %23 = vector.extract_strided_slice %20 {offsets = [0, 64], sizes = [8, 32], strides = [1, 1]} : vector<8x128xf32> to vector<8x32xf32>
    %cst_14 = arith.constant 2.000000e+00 : f32
    %24 = vector.broadcast %cst_14 : f32 to vector<8x32xf32>
    %25 = arith.mulf %24, %23 : vector<8x32xf32>
    %cst_15 = arith.constant 1.000000e+00 : f32
    %26 = vector.broadcast %cst_15 : f32 to vector<8x32xf32>
    %27 = arith.subf %25, %26 : vector<8x32xf32>
    %28 = vector.extract_strided_slice %20 {offsets = [0, 96], sizes = [8, 32], strides = [1, 1]} : vector<8x128xf32> to vector<8x32xf32>
    %29 = arith.mulf %22, %9 : vector<8x32xf32>
    %30 = arith.mulf %21, %27 : vector<8x32xf32>
    %31 = arith.addf %29, %30 : vector<8x32xf32>
    %32 = math.tanh %31 : vector<8x32xf32>
    %33 = arith.mulf %28, %32 : vector<8x32xf32>
    %c1_i32 = arith.constant 1 : i32
    %c8_i32_16 = arith.constant 8 : i32
    %34 = arith.muli %c1_i32, %c8_i32_16 : i32
    %35 = tpu.assume_multiple %34, 8 : i32
    %36 = arith.index_cast %35 : i32 to index
    %c0_17 = arith.constant 0 : index
    %37 = vector.load %arg7[%36, %c0_17] : memref<64x128xf32, #tpu.memory_space<vmem>>, vector<8x128xf32>
    %cst_18 = arith.constant dense<0.000000e+00> : vector<8x128xf32>
    %38 = tpu.matmul %33, %7, %cst_18 {dimension_numbers = #tpu.dot_dimension_numbers<[1], [0], [0], [1], [0, 0, 1, 1], [], []>} : vector<8x32xf32>, vector<32x128xf32>, vector<8x128xf32> -> vector<8x128xf32>
    %39 = arith.addf %37, %38 : vector<8x128xf32>
    %40 = arith.negf %39 : vector<8x128xf32>
    %41 = math.exp %40 : vector<8x128xf32>
    %cst_19 = arith.constant 1.000000e+00 : f32
    %42 = vector.broadcast %cst_19 : f32 to vector<8x128xf32>
    %43 = arith.addf %42, %41 : vector<8x128xf32>
    %44 = arith.divf %42, %43 : vector<8x128xf32>
    %45 = vector.extract_strided_slice %44 {offsets = [0, 0], sizes = [8, 32], strides = [1, 1]} : vector<8x128xf32> to vector<8x32xf32>
    %46 = vector.extract_strided_slice %44 {offsets = [0, 32], sizes = [8, 32], strides = [1, 1]} : vector<8x128xf32> to vector<8x32xf32>
    %47 = vector.extract_strided_slice %44 {offsets = [0, 64], sizes = [8, 32], strides = [1, 1]} : vector<8x128xf32> to vector<8x32xf32>
    %cst_20 = arith.constant 2.000000e+00 : f32
    %48 = vector.broadcast %cst_20 : f32 to vector<8x32xf32>
    %49 = arith.mulf %48, %47 : vector<8x32xf32>
    %cst_21 = arith.constant 1.000000e+00 : f32
    %50 = vector.broadcast %cst_21 : f32 to vector<8x32xf32>
    %51 = arith.subf %49, %50 : vector<8x32xf32>
    %52 = vector.extract_strided_slice %44 {offsets = [0, 96], sizes = [8, 32], strides = [1, 1]} : vector<8x128xf32> to vector<8x32xf32>
    %53 = arith.mulf %46, %31 : vector<8x32xf32>
    %54 = arith.mulf %45, %51 : vector<8x32xf32>
    %55 = arith.addf %53, %54 : vector<8x32xf32>
    %56 = math.tanh %55 : vector<8x32xf32>
    %57 = arith.mulf %52, %56 : vector<8x32xf32>
    %c2_i32 = arith.constant 2 : i32
    %c8_i32_22 = arith.constant 8 : i32
    %58 = arith.muli %c2_i32, %c8_i32_22 : i32
    %59 = tpu.assume_multiple %58, 8 : i32
    %60 = arith.index_cast %59 : i32 to index
    %c0_23 = arith.constant 0 : index
    %61 = vector.load %arg7[%60, %c0_23] : memref<64x128xf32, #tpu.memory_space<vmem>>, vector<8x128xf32>
    %cst_24 = arith.constant dense<0.000000e+00> : vector<8x128xf32>
    %62 = tpu.matmul %57, %7, %cst_24 {dimension_numbers = #tpu.dot_dimension_numbers<[1], [0], [0], [1], [0, 0, 1, 1], [], []>} : vector<8x32xf32>, vector<32x128xf32>, vector<8x128xf32> -> vector<8x128xf32>
    %63 = arith.addf %61, %62 : vector<8x128xf32>
    %64 = arith.negf %63 : vector<8x128xf32>
    %65 = math.exp %64 : vector<8x128xf32>
    %cst_25 = arith.constant 1.000000e+00 : f32
    %66 = vector.broadcast %cst_25 : f32 to vector<8x128xf32>
    %67 = arith.addf %66, %65 : vector<8x128xf32>
    %68 = arith.divf %66, %67 : vector<8x128xf32>
    %69 = vector.extract_strided_slice %68 {offsets = [0, 0], sizes = [8, 32], strides = [1, 1]} : vector<8x128xf32> to vector<8x32xf32>
    %70 = vector.extract_strided_slice %68 {offsets = [0, 32], sizes = [8, 32], strides = [1, 1]} : vector<8x128xf32> to vector<8x32xf32>
    %71 = vector.extract_strided_slice %68 {offsets = [0, 64], sizes = [8, 32], strides = [1, 1]} : vector<8x128xf32> to vector<8x32xf32>
    %cst_26 = arith.constant 2.000000e+00 : f32
    %72 = vector.broadcast %cst_26 : f32 to vector<8x32xf32>
    %73 = arith.mulf %72, %71 : vector<8x32xf32>
    %cst_27 = arith.constant 1.000000e+00 : f32
    %74 = vector.broadcast %cst_27 : f32 to vector<8x32xf32>
    %75 = arith.subf %73, %74 : vector<8x32xf32>
    %76 = vector.extract_strided_slice %68 {offsets = [0, 96], sizes = [8, 32], strides = [1, 1]} : vector<8x128xf32> to vector<8x32xf32>
    %77 = arith.mulf %70, %55 : vector<8x32xf32>
    %78 = arith.mulf %69, %75 : vector<8x32xf32>
    %79 = arith.addf %77, %78 : vector<8x32xf32>
    %80 = math.tanh %79 : vector<8x32xf32>
    %81 = arith.mulf %76, %80 : vector<8x32xf32>
    %c3_i32 = arith.constant 3 : i32
    %c8_i32_28 = arith.constant 8 : i32
    %82 = arith.muli %c3_i32, %c8_i32_28 : i32
    %83 = tpu.assume_multiple %82, 8 : i32
    %84 = arith.index_cast %83 : i32 to index
    %c0_29 = arith.constant 0 : index
    %85 = vector.load %arg7[%84, %c0_29] : memref<64x128xf32, #tpu.memory_space<vmem>>, vector<8x128xf32>
    %cst_30 = arith.constant dense<0.000000e+00> : vector<8x128xf32>
    %86 = tpu.matmul %81, %7, %cst_30 {dimension_numbers = #tpu.dot_dimension_numbers<[1], [0], [0], [1], [0, 0, 1, 1], [], []>} : vector<8x32xf32>, vector<32x128xf32>, vector<8x128xf32> -> vector<8x128xf32>
    %87 = arith.addf %85, %86 : vector<8x128xf32>
    %88 = arith.negf %87 : vector<8x128xf32>
    %89 = math.exp %88 : vector<8x128xf32>
    %cst_31 = arith.constant 1.000000e+00 : f32
    %90 = vector.broadcast %cst_31 : f32 to vector<8x128xf32>
    %91 = arith.addf %90, %89 : vector<8x128xf32>
    %92 = arith.divf %90, %91 : vector<8x128xf32>
    %93 = vector.extract_strided_slice %92 {offsets = [0, 0], sizes = [8, 32], strides = [1, 1]} : vector<8x128xf32> to vector<8x32xf32>
    %94 = vector.extract_strided_slice %92 {offsets = [0, 32], sizes = [8, 32], strides = [1, 1]} : vector<8x128xf32> to vector<8x32xf32>
    %95 = vector.extract_strided_slice %92 {offsets = [0, 64], sizes = [8, 32], strides = [1, 1]} : vector<8x128xf32> to vector<8x32xf32>
    %cst_32 = arith.constant 2.000000e+00 : f32
    %96 = vector.broadcast %cst_32 : f32 to vector<8x32xf32>
    %97 = arith.mulf %96, %95 : vector<8x32xf32>
    %cst_33 = arith.constant 1.000000e+00 : f32
    %98 = vector.broadcast %cst_33 : f32 to vector<8x32xf32>
    %99 = arith.subf %97, %98 : vector<8x32xf32>
    %100 = vector.extract_strided_slice %92 {offsets = [0, 96], sizes = [8, 32], strides = [1, 1]} : vector<8x128xf32> to vector<8x32xf32>
    %101 = arith.mulf %94, %79 : vector<8x32xf32>
    %102 = arith.mulf %93, %99 : vector<8x32xf32>
    %103 = arith.addf %101, %102 : vector<8x32xf32>
    %104 = math.tanh %103 : vector<8x32xf32>
    %105 = arith.mulf %100, %104 : vector<8x32xf32>
    %c4_i32 = arith.constant 4 : i32
    %c8_i32_34 = arith.constant 8 : i32
    %106 = arith.muli %c4_i32, %c8_i32_34 : i32
    %107 = tpu.assume_multiple %106, 8 : i32
    %108 = arith.index_cast %107 : i32 to index
    %c0_35 = arith.constant 0 : index
    %109 = vector.load %arg7[%108, %c0_35] : memref<64x128xf32, #tpu.memory_space<vmem>>, vector<8x128xf32>
    %cst_36 = arith.constant dense<0.000000e+00> : vector<8x128xf32>
    %110 = tpu.matmul %105, %7, %cst_36 {dimension_numbers = #tpu.dot_dimension_numbers<[1], [0], [0], [1], [0, 0, 1, 1], [], []>} : vector<8x32xf32>, vector<32x128xf32>, vector<8x128xf32> -> vector<8x128xf32>
    %111 = arith.addf %109, %110 : vector<8x128xf32>
    %112 = arith.negf %111 : vector<8x128xf32>
    %113 = math.exp %112 : vector<8x128xf32>
    %cst_37 = arith.constant 1.000000e+00 : f32
    %114 = vector.broadcast %cst_37 : f32 to vector<8x128xf32>
    %115 = arith.addf %114, %113 : vector<8x128xf32>
    %116 = arith.divf %114, %115 : vector<8x128xf32>
    %117 = vector.extract_strided_slice %116 {offsets = [0, 0], sizes = [8, 32], strides = [1, 1]} : vector<8x128xf32> to vector<8x32xf32>
    %118 = vector.extract_strided_slice %116 {offsets = [0, 32], sizes = [8, 32], strides = [1, 1]} : vector<8x128xf32> to vector<8x32xf32>
    %119 = vector.extract_strided_slice %116 {offsets = [0, 64], sizes = [8, 32], strides = [1, 1]} : vector<8x128xf32> to vector<8x32xf32>
    %cst_38 = arith.constant 2.000000e+00 : f32
    %120 = vector.broadcast %cst_38 : f32 to vector<8x32xf32>
    %121 = arith.mulf %120, %119 : vector<8x32xf32>
    %cst_39 = arith.constant 1.000000e+00 : f32
    %122 = vector.broadcast %cst_39 : f32 to vector<8x32xf32>
    %123 = arith.subf %121, %122 : vector<8x32xf32>
    %124 = vector.extract_strided_slice %116 {offsets = [0, 96], sizes = [8, 32], strides = [1, 1]} : vector<8x128xf32> to vector<8x32xf32>
    %125 = arith.mulf %118, %103 : vector<8x32xf32>
    %126 = arith.mulf %117, %123 : vector<8x32xf32>
    %127 = arith.addf %125, %126 : vector<8x32xf32>
    %128 = math.tanh %127 : vector<8x32xf32>
    %129 = arith.mulf %124, %128 : vector<8x32xf32>
    %c5_i32 = arith.constant 5 : i32
    %c8_i32_40 = arith.constant 8 : i32
    %130 = arith.muli %c5_i32, %c8_i32_40 : i32
    %131 = tpu.assume_multiple %130, 8 : i32
    %132 = arith.index_cast %131 : i32 to index
    %c0_41 = arith.constant 0 : index
    %133 = vector.load %arg7[%132, %c0_41] : memref<64x128xf32, #tpu.memory_space<vmem>>, vector<8x128xf32>
    %cst_42 = arith.constant dense<0.000000e+00> : vector<8x128xf32>
    %134 = tpu.matmul %129, %7, %cst_42 {dimension_numbers = #tpu.dot_dimension_numbers<[1], [0], [0], [1], [0, 0, 1, 1], [], []>} : vector<8x32xf32>, vector<32x128xf32>, vector<8x128xf32> -> vector<8x128xf32>
    %135 = arith.addf %133, %134 : vector<8x128xf32>
    %136 = arith.negf %135 : vector<8x128xf32>
    %137 = math.exp %136 : vector<8x128xf32>
    %cst_43 = arith.constant 1.000000e+00 : f32
    %138 = vector.broadcast %cst_43 : f32 to vector<8x128xf32>
    %139 = arith.addf %138, %137 : vector<8x128xf32>
    %140 = arith.divf %138, %139 : vector<8x128xf32>
    %141 = vector.extract_strided_slice %140 {offsets = [0, 0], sizes = [8, 32], strides = [1, 1]} : vector<8x128xf32> to vector<8x32xf32>
    %142 = vector.extract_strided_slice %140 {offsets = [0, 32], sizes = [8, 32], strides = [1, 1]} : vector<8x128xf32> to vector<8x32xf32>
    %143 = vector.extract_strided_slice %140 {offsets = [0, 64], sizes = [8, 32], strides = [1, 1]} : vector<8x128xf32> to vector<8x32xf32>
    %cst_44 = arith.constant 2.000000e+00 : f32
    %144 = vector.broadcast %cst_44 : f32 to vector<8x32xf32>
    %145 = arith.mulf %144, %143 : vector<8x32xf32>
    %cst_45 = arith.constant 1.000000e+00 : f32
    %146 = vector.broadcast %cst_45 : f32 to vector<8x32xf32>
    %147 = arith.subf %145, %146 : vector<8x32xf32>
    %148 = vector.extract_strided_slice %140 {offsets = [0, 96], sizes = [8, 32], strides = [1, 1]} : vector<8x128xf32> to vector<8x32xf32>
    %149 = arith.mulf %142, %127 : vector<8x32xf32>
    %150 = arith.mulf %141, %147 : vector<8x32xf32>
    %151 = arith.addf %149, %150 : vector<8x32xf32>
    %152 = math.tanh %151 : vector<8x32xf32>
    %153 = arith.mulf %148, %152 : vector<8x32xf32>
    %c6_i32 = arith.constant 6 : i32
    %c8_i32_46 = arith.constant 8 : i32
    %154 = arith.muli %c6_i32, %c8_i32_46 : i32
    %155 = tpu.assume_multiple %154, 8 : i32
    %156 = arith.index_cast %155 : i32 to index
    %c0_47 = arith.constant 0 : index
    %157 = vector.load %arg7[%156, %c0_47] : memref<64x128xf32, #tpu.memory_space<vmem>>, vector<8x128xf32>
    %cst_48 = arith.constant dense<0.000000e+00> : vector<8x128xf32>
    %158 = tpu.matmul %153, %7, %cst_48 {dimension_numbers = #tpu.dot_dimension_numbers<[1], [0], [0], [1], [0, 0, 1, 1], [], []>} : vector<8x32xf32>, vector<32x128xf32>, vector<8x128xf32> -> vector<8x128xf32>
    %159 = arith.addf %157, %158 : vector<8x128xf32>
    %160 = arith.negf %159 : vector<8x128xf32>
    %161 = math.exp %160 : vector<8x128xf32>
    %cst_49 = arith.constant 1.000000e+00 : f32
    %162 = vector.broadcast %cst_49 : f32 to vector<8x128xf32>
    %163 = arith.addf %162, %161 : vector<8x128xf32>
    %164 = arith.divf %162, %163 : vector<8x128xf32>
    %165 = vector.extract_strided_slice %164 {offsets = [0, 0], sizes = [8, 32], strides = [1, 1]} : vector<8x128xf32> to vector<8x32xf32>
    %166 = vector.extract_strided_slice %164 {offsets = [0, 32], sizes = [8, 32], strides = [1, 1]} : vector<8x128xf32> to vector<8x32xf32>
    %167 = vector.extract_strided_slice %164 {offsets = [0, 64], sizes = [8, 32], strides = [1, 1]} : vector<8x128xf32> to vector<8x32xf32>
    %cst_50 = arith.constant 2.000000e+00 : f32
    %168 = vector.broadcast %cst_50 : f32 to vector<8x32xf32>
    %169 = arith.mulf %168, %167 : vector<8x32xf32>
    %cst_51 = arith.constant 1.000000e+00 : f32
    %170 = vector.broadcast %cst_51 : f32 to vector<8x32xf32>
    %171 = arith.subf %169, %170 : vector<8x32xf32>
    %172 = vector.extract_strided_slice %164 {offsets = [0, 96], sizes = [8, 32], strides = [1, 1]} : vector<8x128xf32> to vector<8x32xf32>
    %173 = arith.mulf %166, %151 : vector<8x32xf32>
    %174 = arith.mulf %165, %171 : vector<8x32xf32>
    %175 = arith.addf %173, %174 : vector<8x32xf32>
    %176 = math.tanh %175 : vector<8x32xf32>
    %177 = arith.mulf %172, %176 : vector<8x32xf32>
    %c7_i32 = arith.constant 7 : i32
    %c8_i32_52 = arith.constant 8 : i32
    %178 = arith.muli %c7_i32, %c8_i32_52 : i32
    %179 = tpu.assume_multiple %178, 8 : i32
    %180 = arith.index_cast %179 : i32 to index
    %c0_53 = arith.constant 0 : index
    %181 = vector.load %arg7[%180, %c0_53] : memref<64x128xf32, #tpu.memory_space<vmem>>, vector<8x128xf32>
    %cst_54 = arith.constant dense<0.000000e+00> : vector<8x128xf32>
    %182 = tpu.matmul %177, %7, %cst_54 {dimension_numbers = #tpu.dot_dimension_numbers<[1], [0], [0], [1], [0, 0, 1, 1], [], []>} : vector<8x32xf32>, vector<32x128xf32>, vector<8x128xf32> -> vector<8x128xf32>
    %183 = arith.addf %181, %182 : vector<8x128xf32>
    %184 = arith.negf %183 : vector<8x128xf32>
    %185 = math.exp %184 : vector<8x128xf32>
    %cst_55 = arith.constant 1.000000e+00 : f32
    %186 = vector.broadcast %cst_55 : f32 to vector<8x128xf32>
    %187 = arith.addf %186, %185 : vector<8x128xf32>
    %188 = arith.divf %186, %187 : vector<8x128xf32>
    %189 = vector.extract_strided_slice %188 {offsets = [0, 0], sizes = [8, 32], strides = [1, 1]} : vector<8x128xf32> to vector<8x32xf32>
    %190 = vector.extract_strided_slice %188 {offsets = [0, 32], sizes = [8, 32], strides = [1, 1]} : vector<8x128xf32> to vector<8x32xf32>
    %191 = vector.extract_strided_slice %188 {offsets = [0, 64], sizes = [8, 32], strides = [1, 1]} : vector<8x128xf32> to vector<8x32xf32>
    %cst_56 = arith.constant 2.000000e+00 : f32
    %192 = vector.broadcast %cst_56 : f32 to vector<8x32xf32>
    %193 = arith.mulf %192, %191 : vector<8x32xf32>
    %cst_57 = arith.constant 1.000000e+00 : f32
    %194 = vector.broadcast %cst_57 : f32 to vector<8x32xf32>
    %195 = arith.subf %193, %194 : vector<8x32xf32>
    %196 = vector.extract_strided_slice %188 {offsets = [0, 96], sizes = [8, 32], strides = [1, 1]} : vector<8x128xf32> to vector<8x32xf32>
    %197 = arith.mulf %190, %175 : vector<8x32xf32>
    %198 = arith.mulf %189, %195 : vector<8x32xf32>
    %199 = arith.addf %197, %198 : vector<8x32xf32>
    %200 = math.tanh %199 : vector<8x32xf32>
    %201 = arith.mulf %196, %200 : vector<8x32xf32>
    %c8_i32_58 = arith.constant 8 : i32
    %c0_59 = arith.constant 0 : index
    %c0_60 = arith.constant 0 : index
    %202 = vector.load %arg4[%c0_59, %c0_60] : memref<32x128xf32, #tpu.memory_space<vmem>>, vector<32x128xf32>
    %cst_61 = arith.constant dense<0.000000e+00> : vector<8x128xf32>
    %203 = tpu.matmul %201, %202, %cst_61 {dimension_numbers = #tpu.dot_dimension_numbers<[1], [0], [0], [1], [0, 0, 1, 1], [], []>} : vector<8x32xf32>, vector<32x128xf32>, vector<8x128xf32> -> vector<8x128xf32>
    %c0_62 = arith.constant 0 : index
    %c0_63 = arith.constant 0 : index
    %204 = vector.load %arg5[%c0_62, %c0_63] : memref<1x128xf32, #tpu.memory_space<vmem>>, vector<1x128xf32>
    %205 = vector.broadcast %204 : vector<1x128xf32> to vector<8x128xf32>
    %206 = arith.addf %203, %205 : vector<8x128xf32>
    %c0_64 = arith.constant 0 : index
    %c0_65 = arith.constant 0 : index
    %207 = vector.load %arg6[%c0_64, %c0_65] : memref<8x128xf32, #tpu.memory_space<vmem>>, vector<8x128xf32>
    tpu.vector_store %arg6[%c0_64, %c0_65], %206 {strides = array<i32>} : memref<8x128xf32, #tpu.memory_space<vmem>>, vector<8x128xf32>,
    return
  }
}

</mosaic_0001>

<llo_original>
// kernel: tpu_custom_call.1
$region0: #{tpu_custom_call.1}
  #allocation0 [shape = 'u32[]', space=smem, size = 0x4, offset = 0x4, fixed_abs, tag = 'smem constant byte address 0x4 - core index']
  #allocation1 [shape = 'u32[144,128]{1,0:T(1,128)}', space=vmem, size = 0x12000, scoped, tag = 'internal scratch']
  #allocation2 [shape = 'f32[64,128]{1,0:T(8,128)}', space=vmem, size = 0x8000, scoped, tag = 'scratch operand']
  %s0 = inlined_call_operand.vmem [shape: f32[64,16], index: 0, kind: input, shape index: {}]
  %s1 = inlined_call_operand.vmem [shape: f32[16,128], index: 1, kind: input, shape index: {}]
  %s2 = inlined_call_operand.vmem [shape: f32[32,128], index: 2, kind: input, shape index: {}]
  %s3 = inlined_call_operand.vmem [shape: f32[1,128], index: 3, kind: input, shape index: {}]
  %s4 = inlined_call_operand.vmem [shape: f32[32,128], index: 4, kind: input, shape index: {}]
  %s5 = inlined_call_operand.vmem [shape: f32[1,128], index: 5, kind: input, shape index: {}]
  %s6 = inlined_call_operand.hbm [shape: f32[8,128], index: 6, kind: output, shape index: {}]
  %s7 = sld [smem:[#allocation0]]
  $region34: #{tpu_custom_call.1} parent=0
    _
  %s9 = ssub.s32 1, %s7
  %s10 = scalar_select 0, %s9, %s7
  $region1: #{tpu_custom_call.1} parent=0
    #allocation3 [shape = 'u8[4096]{0}', space=vmem, size = 0x1000, scoped, tag = 'output window, operand 0, single buffered']
    #allocation4 [shape = 's32[1]{0}', space=sflag, size = 0x4, scoped, tag = 'scoped memory for tpu_custom_call.1']
    %11 = vsyncpa [#allocation4], 0
    // Predicated region
    $region2: #{tpu_custom_call.1} parent=1 // pred_check
      _
    $region3: #{tpu_custom_call.1} parent=1 // pred_check_branch
      %13 = sbr.rel (0) target = $region5
    $region4: #{tpu_custom_call.1} parent=1 // pred_region
      _
    $region5: #{tpu_custom_call.1} parent=1 // pred_fallthru
      _
    // Predicated region
    $region6: #{tpu_custom_call.1} parent=1 // pred_check
      _
    $region7: #{tpu_custom_call.1} parent=1 // pred_check_branch
      %15 = sbr.rel (0) target = $region9
    $region8: #{tpu_custom_call.1} parent=1 // pred_region
      _
    $region9: #{tpu_custom_call.1} parent=1 // pred_fallthru
      _
    // Predicated region
    $region10: #{tpu_custom_call.1} parent=1 // pred_check
      _
    $region11: #{tpu_custom_call.1} parent=1 // pred_check_branch
      %17 = sbr.rel (0) target = $region13
    $region12: #{tpu_custom_call.1} parent=1 // pred_region
      _
    $region13: #{tpu_custom_call.1} parent=1 // pred_fallthru
      _
    // Predicated region
    $region14: #{tpu_custom_call.1} parent=1 // pred_check
      _
    $region15: #{tpu_custom_call.1} parent=1 // pred_check_branch
      %19 = sbr.rel (0) target = $region17
    $region16: #{tpu_custom_call.1} parent=1 // pred_region
      _
    $region17: #{tpu_custom_call.1} parent=1 // pred_fallthru
      _
    // Predicated region
    $region18: #{tpu_custom_call.1} parent=1 // pred_check
      _
    $region19: #{tpu_custom_call.1} parent=1 // pred_check_branch
      %21 = sbr.rel (0) target = $region21
    $region20: #{tpu_custom_call.1} parent=1 // pred_region
      _
    $region21: #{tpu_custom_call.1} parent=1 // pred_fallthru
      _
    // Predicated region
    $region22: #{tpu_custom_call.1} parent=1 // pred_check
      _
    $region23: #{tpu_custom_call.1} parent=1 // pred_check_branch
      %23 = sbr.rel (0) target = $region25
    $region24: #{tpu_custom_call.1} parent=1 // pred_region
      _
    $region25: #{tpu_custom_call.1} parent=1 // pred_fallthru
      _
    %v24 = vld [vmem:[%s0] sm:$0xff]
    %v25 = vld [vmem:[%s0 + $0x8] sm:$0xff]
    %v26 = vld [vmem:[%s0 + $0x10] sm:$0xff]
    %v27 = vld [vmem:[%s0 + $0x18] sm:$0xff]
    %v28 = vld [vmem:[%s0 + $0x20] sm:$0xff]
    %v29 = vld [vmem:[%s0 + $0x28] sm:$0xff]
    %v30 = vld [vmem:[%s0 + $0x30] sm:$0xff]
    %v31 = vld [vmem:[%s0 + $0x38] sm:$0xff]
    %v32 = vld [vmem:[%s1] sm:$0xff]
    %v33 = vld [vmem:[%s1 + $0x8] sm:$0xff]
    %v34 = vld [vmem:[%s3] sm:$0x1]
    %v36 = vlaneseq
    %v37 = vshrl.u32 %v36, 7
    %v38 = vsub.s32 0, %v37
    %v39 = vrot.slane %v34, %v38
    %vm41 = vcmask 130048
    %v43 = vsel %vm41, %v24, 0
    %v46 = vsel %vm41, %v25, 0
    %v49 = vsel %vm41, %v26, 0
    %v52 = vsel %vm41, %v27, 0
    %v55 = vsel %vm41, %v28, 0
    %v58 = vsel %vm41, %v29, 0
    %v61 = vsel %vm41, %v30, 0
    %v64 = vsel %vm41, %v31, 0
    %66 = vmatprep.subr.mxu0 0.0
    %67 = vmatpush1.msra.mxu0 %v32
    %68 = vmatprep.subr.mxu0 0.0
    %69 = vmatpush1.msra.mxu0 %v33
    %70 = vmatprep.subr.mxu0 0.0
    %71 = vmatpush1.msra.mxu0 0.0
    %72 = vmatprep.subr.mxu0 0.0
    %73 = vmatpush1.msra.mxu0 0.0
    %74 = vmatprep.subr.mxu0 0.0
    %75 = vmatpush1.msra.mxu0 0.0
    %76 = vmatprep.subr.mxu0 0.0
    %77 = vmatpush1.msra.mxu0 0.0
    %78 = vmatprep.subr.mxu0 0.0
    %79 = vmatpush1.msra.mxu0 0.0
    %80 = vmatprep.subr.mxu0 0.0
    %81 = vmatpush1.msra.mxu0 0.0
    %82 = vmatprep.subr.mxu0 0.0
    %83 = vmatpush1.msra.mxu0 0.0
    %84 = vmatprep.subr.mxu0 0.0
    %85 = vmatpush1.msra.mxu0 0.0
    %86 = vmatprep.subr.mxu0 0.0
    %87 = vmatpush1.msra.mxu0 0.0
    %88 = vmatprep.subr.mxu0 0.0
    %89 = vmatpush1.msra.mxu0 0.0
    %90 = vmatprep.subr.mxu0 0.0
    %91 = vmatpush1.msra.mxu0 0.0
    %92 = vmatprep.subr.mxu0 0.0
    %93 = vmatpush1.msra.mxu0 0.0
    %94 = vmatprep.subr.mxu0 0.0
    %95 = vmatpush1.msra.mxu0 0.0
    %96 = vmatprep.subr.mxu0 0.0
    %97 = vmatpush1.msra.mxu0 0.0
    %98 = vmatprep.subr.mxu0 0.0
    %99 = vmatpush1.msra.mxu0 0.0
    %100 = vmatprep.subr.mxu0 0.0
    %101 = vmatpush1.msra.mxu0 0.0
    %102 = vmatprep.subr.mxu0 0.0
    %103 = vmatpush1.msra.mxu0 0.0
    %104 = vmatprep.subr.mxu0 0.0
    %105 = vmatpush1.msra.mxu0 0.0
    %106 = vmatprep.subr.mxu0 0.0
    %107 = vmatpush1.msra.mxu0 0.0
    %108 = vmatprep.subr.mxu0 0.0
    %109 = vmatpush1.msra.mxu0 0.0
    %110 = vmatprep.subr.mxu0 0.0
    %111 = vmatpush1.msra.mxu0 0.0
    %112 = vmatprep.subr.mxu0 0.0
    %113 = vmatpush1.msra.mxu0 0.0
    %114 = vmatprep.subr.mxu0 0.0
    %115 = vmatpush1.msra.mxu0 0.0
    %116 = vmatprep.subr.mxu0 0.0
    %117 = vmatpush1.msra.mxu0 0.0
    %118 = vmatprep.subr.mxu0 0.0
    %119 = vmatpush1.msra.mxu0 0.0
    %120 = vmatprep.subr.mxu0 0.0
    %121 = vmatpush1.msra.mxu0 0.0
    %122 = vmatprep.subr.mxu0 0.0
    %123 = vmatpush1.msra.mxu0 0.0
    %124 = vmatprep.subr.mxu0 0.0
    %125 = vmatpush1.msra.mxu0 0.0
    %126 = vmatprep.subr.mxu0 0.0
    %127 = vmatpush1.msra.mxu0 0.0
    %128 = vmatprep.subr.mxu0 0.0
    %129 = vmatpush1.msra.mxu0 0.0
    %130 = vmatprep.mubr.f32.mxu0 0.0
    %131 = vmatmul.mubr.f32.gmra.mrb[0].mxu0 %v43
    %v132 = vpop.f32.mrb[0].mxu0
    %v133 = vadd.f32 %v39, %v132
    %v134 = vpop.f32.mrb[0].mxu0
    %135 = vmatprep.mubr.f32.mxu0 0.0
    %136 = vmatmul.mubr.f32.gmra.mrb[0].mxu0 %v46
    %v137 = vpop.f32.mrb[0].mxu0
    %v138 = vadd.f32 %v39, %v137
    %v139 = vpop.f32.mrb[0].mxu0
    %140 = vmatprep.mubr.f32.mxu0 0.0
    %141 = vmatmul.mubr.f32.gmra.mrb[0].mxu0 %v49
    %v142 = vpop.f32.mrb[0].mxu0
    %v143 = vadd.f32 %v39, %v142
    %v144 = vpop.f32.mrb[0].mxu0
    %145 = vmatprep.mubr.f32.mxu0 0.0
    %146 = vmatmul.mubr.f32.gmra.mrb[0].mxu0 %v52
    %v147 = vpop.f32.mrb[0].mxu0
    %v148 = vadd.f32 %v39, %v147
    %v149 = vpop.f32.mrb[0].mxu0
    %150 = vmatprep.mubr.f32.mxu0 0.0
    %151 = vmatmul.mubr.f32.gmra.mrb[0].mxu0 %v55
    %v152 = vpop.f32.mrb[0].mxu0
    %v153 = vadd.f32 %v39, %v152
    %v154 = vpop.f32.mrb[0].mxu0
    %155 = vmatprep.mubr.f32.mxu0 0.0
    %156 = vmatmul.mubr.f32.gmra.mrb[0].mxu0 %v58
    %v157 = vpop.f32.mrb[0].mxu0
    %v158 = vadd.f32 %v39, %v157
    %v159 = vpop.f32.mrb[0].mxu0
    %160 = vmatprep.mubr.f32.mxu0 0.0
    %161 = vmatmul.mubr.f32.gmra.mrb[0].mxu0 %v61
    %v162 = vpop.f32.mrb[0].mxu0
    %v163 = vadd.f32 %v39, %v162
    %v164 = vpop.f32.mrb[0].mxu0
    %165 = vmatprep.mubr.f32.mxu0 0.0
    %166 = vmatmul.mubr.f32.gmra.mrb[0].mxu0 %v64
    %v167 = vpop.f32.mrb[0].mxu0
    %v168 = vadd.f32 %v39, %v167
    %v169 = vpop.f32.mrb[0].mxu0
    %170 = vdwg.mxu0
    %171 = vst [vmem:[#allocation2] sm:$0xff] %v133
    %172 = vst [vmem:[#allocation2 + $0x8] sm:$0xff] %v138
    %173 = vst [vmem:[#allocation2 + $0x10] sm:$0xff] %v143
    %174 = vst [vmem:[#allocation2 + $0x18] sm:$0xff] %v148
    %175 = vst [vmem:[#allocation2 + $0x20] sm:$0xff] %v153
    %176 = vst [vmem:[#allocation2 + $0x28] sm:$0xff] %v158
    %177 = vst [vmem:[#allocation2 + $0x30] sm:$0xff] %v163
    %178 = vst [vmem:[#allocation2 + $0x38] sm:$0xff] %v168
    %v179 = vld [vmem:[%s2] sm:$0xff]
    %v180 = vld [vmem:[%s2 + $0x8] sm:$0xff]
    %v181 = vld [vmem:[%s2 + $0x10] sm:$0xff]
    %v182 = vld [vmem:[%s2 + $0x18] sm:$0xff]
    %v183 = vld [vmem:[#allocation2] sm:$0xff]
    %vm184 = vcmask 261120
    %v186 = vsel %vm184, 0.0, 0
    %188 = vmatprep.subr.mxu0 0.0
    %189 = vmatpush1.msra.mxu0 %v179
    %190 = vmatprep.subr.mxu0 0.0
    %191 = vmatpush1.msra.mxu0 %v180
    %192 = vmatprep.subr.mxu0 0.0
    %193 = vmatpush1.msra.mxu0 %v181
    %194 = vmatprep.subr.mxu0 0.0
    %195 = vmatpush1.msra.mxu0 %v182
    %196 = vmatprep.subr.mxu0 0.0
    %197 = vmatpush1.msra.mxu0 0.0
    %198 = vmatprep.subr.mxu0 0.0
    %199 = vmatpush1.msra.mxu0 0.0
    %200 = vmatprep.subr.mxu0 0.0
    %201 = vmatpush1.msra.mxu0 0.0
    %202 = vmatprep.subr.mxu0 0.0
    %203 = vmatpush1.msra.mxu0 0.0
    %204 = vmatprep.subr.mxu0 0.0
    %205 = vmatpush1.msra.mxu0 0.0
    %206 = vmatprep.subr.mxu0 0.0
    %207 = vmatpush1.msra.mxu0 0.0
    %208 = vmatprep.subr.mxu0 0.0
    %209 = vmatpush1.msra.mxu0 0.0
    %210 = vmatprep.subr.mxu0 0.0
    %211 = vmatpush1.msra.mxu0 0.0
    %212 = vmatprep.subr.mxu0 0.0
    %213 = vmatpush1.msra.mxu0 0.0
    %214 = vmatprep.subr.mxu0 0.0
    %215 = vmatpush1.msra.mxu0 0.0
    %216 = vmatprep.subr.mxu0 0.0
    %217 = vmatpush1.msra.mxu0 0.0
    %218 = vmatprep.subr.mxu0 0.0
    %219 = vmatpush1.msra.mxu0 0.0
    %220 = vmatprep.subr.mxu0 0.0
    %221 = vmatpush1.msra.mxu0 0.0
    %222 = vmatprep.subr.mxu0 0.0
    %223 = vmatpush1.msra.mxu0 0.0
    %224 = vmatprep.subr.mxu0 0.0
    %225 = vmatpush1.msra.mxu0 0.0
    %226 = vmatprep.subr.mxu0 0.0
    %227 = vmatpush1.msra.mxu0 0.0
    %228 = vmatprep.subr.mxu0 0.0
    %229 = vmatpush1.msra.mxu0 0.0
    %230 = vmatprep.subr.mxu0 0.0
    %231 = vmatpush1.msra.mxu0 0.0
    %232 = vmatprep.subr.mxu0 0.0
    %233 = vmatpush1.msra.mxu0 0.0
    %234 = vmatprep.subr.mxu0 0.0
    %235 = vmatpush1.msra.mxu0 0.0
    %236 = vmatprep.subr.mxu0 0.0
    %237 = vmatpush1.msra.mxu0 0.0
    %238 = vmatprep.subr.mxu0 0.0
    %239 = vmatpush1.msra.mxu0 0.0
    %240 = vmatprep.subr.mxu0 0.0
    %241 = vmatpush1.msra.mxu0 0.0
    %242 = vmatprep.subr.mxu0 0.0
    %243 = vmatpush1.msra.mxu0 0.0
    %244 = vmatprep.subr.mxu0 0.0
    %245 = vmatpush1.msra.mxu0 0.0
    %246 = vmatprep.subr.mxu0 0.0
    %247 = vmatpush1.msra.mxu0 0.0
    %248 = vmatprep.subr.mxu0 0.0
    %249 = vmatpush1.msra.mxu0 0.0
    %250 = vmatprep.subr.mxu0 0.0
    %251 = vmatpush1.msra.mxu0 0.0
    %252 = vmatprep.mubr.f32.mxu0 0.0
    %253 = vmatmul.mubr.f32.gmra.mrb[0].mxu0 %v186
    %v254 = vpop.f32.mrb[0].mxu0
    %v255 = vadd.f32 0.0, %v254
    %v256 = vpop.f32.mrb[0].mxu0
    %257 = vdwg.mxu0
    %v258 = vadd.f32 %v183, %v255
    %v259 = vxor.u32 %v258, 2147483648
    %v260 = vmul.f32 %v259, 1.442695
    %v261 = vpow.pop %v260
    %v262 = vadd.f32 %v261, 1.0
    %v263 = vrcp.pop %v262
    %v264 = vmul.f32 1.0, %v263
    %v265 = vmul.f32 %v264, 2.0
    %v266 = vsub.f32 %v265, 1.0
    %v267 = vmul.f32 %v264, 0.0
    %269 = vrot.lane.b32.xlu0 %v266, 64
    %v270 = vpop.permute.xlu0 %269
    %v272 = vmul.f32 %v264, %v270
    %274 = vrot.lane.b32.xlu0 %v272, 32
    %v275 = vpop.permute.xlu0 %274
    %v277 = vadd.f32 %v267, %v275
    %v278 = vtanh.pop %v277
    %280 = vrot.lane.b32.xlu0 %v278, 64
    %v281 = vpop.permute.xlu0 %280
    %v283 = vmul.f32 %v264, %v281
    %s284 = scalar_lea.vmem [#allocation2], 8
    %v285 = vld [vmem:[%s284] sm:$0xff]
    %287 = vrot.lane.b32.xlu0 %v283, 32
    %v288 = vpop.permute.xlu0 %287
    %v289 = vsel %vm184, %v288, 0
    %291 = vmatprep.subr.mxu0 0.0
    %292 = vmatpush1.msra.mxu0 %v179
    %293 = vmatprep.subr.mxu0 0.0
    %294 = vmatpush1.msra.mxu0 %v180
    %295 = vmatprep.subr.mxu0 0.0
    %296 = vmatpush1.msra.mxu0 %v181
    %297 = vmatprep.subr.mxu0 0.0
    %298 = vmatpush1.msra.mxu0 %v182
    %299 = vmatprep.subr.mxu0 0.0
    %300 = vmatpush1.msra.mxu0 0.0
    %301 = vmatprep.subr.mxu0 0.0
    %302 = vmatpush1.msra.mxu0 0.0
    %303 = vmatprep.subr.mxu0 0.0
    %304 = vmatpush1.msra.mxu0 0.0
    %305 = vmatprep.subr.mxu0 0.0
    %306 = vmatpush1.msra.mxu0 0.0
    %307 = vmatprep.subr.mxu0 0.0
    %308 = vmatpush1.msra.mxu0 0.0
    %309 = vmatprep.subr.mxu0 0.0
    %310 = vmatpush1.msra.mxu0 0.0
    %311 = vmatprep.subr.mxu0 0.0
    %312 = vmatpush1.msra.mxu0 0.0
    %313 = vmatprep.subr.mxu0 0.0
    %314 = vmatpush1.msra.mxu0 0.0
    %315 = vmatprep.subr.mxu0 0.0
    %316 = vmatpush1.msra.mxu0 0.0
    %317 = vmatprep.subr.mxu0 0.0
    %318 = vmatpush1.msra.mxu0 0.0
    %319 = vmatprep.subr.mxu0 0.0
    %320 = vmatpush1.msra.mxu0 0.0
    %321 = vmatprep.subr.mxu0 0.0
    %322 = vmatpush1.msra.mxu0 0.0
    %323 = vmatprep.subr.mxu0 0.0
    %324 = vmatpush1.msra.mxu0 0.0
    %325 = vmatprep.subr.mxu0 0.0
    %326 = vmatpush1.msra.mxu0 0.0
    %327 = vmatprep.subr.mxu0 0.0
    %328 = vmatpush1.msra.mxu0 0.0
    %329 = vmatprep.subr.mxu0 0.0
    %330 = vmatpush1.msra.mxu0 0.0
    %331 = vmatprep.subr.mxu0 0.0
    %332 = vmatpush1.msra.mxu0 0.0
    %333 = vmatprep.subr.mxu0 0.0
    %334 = vmatpush1.msra.mxu0 0.0
    %335 = vmatprep.subr.mxu0 0.0
    %336 = vmatpush1.msra.mxu0 0.0
    %337 = vmatprep.subr.mxu0 0.0
    %338 = vmatpush1.msra.mxu0 0.0
    %339 = vmatprep.subr.mxu0 0.0
    %340 = vmatpush1.msra.mxu0 0.0
    %341 = vmatprep.subr.mxu0 0.0
    %342 = vmatpush1.msra.mxu0 0.0
    %343 = vmatprep.subr.mxu0 0.0
    %344 = vmatpush1.msra.mxu0 0.0
    %345 = vmatprep.subr.mxu0 0.0
    %346 = vmatpush1.msra.mxu0 0.0
    %347 = vmatprep.subr.mxu0 0.0
    %348 = vmatpush1.msra.mxu0 0.0
    %349 = vmatprep.subr.mxu0 0.0
    %350 = vmatpush1.msra.mxu0 0.0
    %351 = vmatprep.subr.mxu0 0.0
    %352 = vmatpush1.msra.mxu0 0.0
    %353 = vmatprep.subr.mxu0 0.0
    %354 = vmatpush1.msra.mxu0 0.0
    %355 = vmatprep.mubr.f32.mxu0 0.0
    %356 = vmatmul.mubr.f32.gmra.mrb[0].mxu0 %v289
    %v357 = vpop.f32.mrb[0].mxu0
    %v358 = vadd.f32 0.0, %v357
    %v359 = vpop.f32.mrb[0].mxu0
    %360 = vdwg.mxu0
    %v361 = vadd.f32 %v285, %v358
    %v362 = vxor.u32 %v361, 2147483648
    %v363 = vmul.f32 %v362, 1.442695
    %v364 = vpow.pop %v363
    %v365 = vadd.f32 %v364, 1.0
    %v366 = vrcp.pop %v365
    %v367 = vmul.f32 1.0, %v366
    %v368 = vmul.f32 %v367, 2.0
    %v369 = vsub.f32 %v368, 1.0
    %v370 = vmul.f32 %v367, %v277
    %372 = vrot.lane.b32.xlu0 %v369, 64
    %v373 = vpop.permute.xlu0 %372
    %v375 = vmul.f32 %v367, %v373
    %377 = vrot.lane.b32.xlu0 %v375, 32
    %v378 = vpop.permute.xlu0 %377
    %v380 = vadd.f32 %v370, %v378
    %v381 = vtanh.pop %v380
    %383 = vrot.lane.b32.xlu0 %v381, 64
    %v384 = vpop.permute.xlu0 %383
    %v386 = vmul.f32 %v367, %v384
    %s387 = scalar_lea.vmem [#allocation2], 16
    %v388 = vld [vmem:[%s387] sm:$0xff]
    %390 = vrot.lane.b32.xlu0 %v386, 32
    %v391 = vpop.permute.xlu0 %390
    %v392 = vsel %vm184, %v391, 0
    %394 = vmatprep.subr.mxu0 0.0
    %395 = vmatpush1.msra.mxu0 %v179
    %396 = vmatprep.subr.mxu0 0.0
    %397 = vmatpush1.msra.mxu0 %v180
    %398 = vmatprep.subr.mxu0 0.0
    %399 = vmatpush1.msra.mxu0 %v181
    %400 = vmatprep.subr.mxu0 0.0
    %401 = vmatpush1.msra.mxu0 %v182
    %402 = vmatprep.subr.mxu0 0.0
    %403 = vmatpush1.msra.mxu0 0.0
    %404 = vmatprep.subr.mxu0 0.0
    %405 = vmatpush1.msra.mxu0 0.0
    %406 = vmatprep.subr.mxu0 0.0
    %407 = vmatpush1.msra.mxu0 0.0
    %408 = vmatprep.subr.mxu0 0.0
    %409 = vmatpush1.msra.mxu0 0.0
    %410 = vmatprep.subr.mxu0 0.0
    %411 = vmatpush1.msra.mxu0 0.0
    %412 = vmatprep.subr.mxu0 0.0
    %413 = vmatpush1.msra.mxu0 0.0
    %414 = vmatprep.subr.mxu0 0.0
    %415 = vmatpush1.msra.mxu0 0.0
    %416 = vmatprep.subr.mxu0 0.0
    %417 = vmatpush1.msra.mxu0 0.0
    %418 = vmatprep.subr.mxu0 0.0
    %419 = vmatpush1.msra.mxu0 0.0
    %420 = vmatprep.subr.mxu0 0.0
    %421 = vmatpush1.msra.mxu0 0.0
    %422 = vmatprep.subr.mxu0 0.0
    %423 = vmatpush1.msra.mxu0 0.0
    %424 = vmatprep.subr.mxu0 0.0
    %425 = vmatpush1.msra.mxu0 0.0
    %426 = vmatprep.subr.mxu0 0.0
    %427 = vmatpush1.msra.mxu0 0.0
    %428 = vmatprep.subr.mxu0 0.0
    %429 = vmatpush1.msra.mxu0 0.0
    %430 = vmatprep.subr.mxu0 0.0
    %431 = vmatpush1.msra.mxu0 0.0
    %432 = vmatprep.subr.mxu0 0.0
    %433 = vmatpush1.msra.mxu0 0.0
    %434 = vmatprep.subr.mxu0 0.0
    %435 = vmatpush1.msra.mxu0 0.0
    %436 = vmatprep.subr.mxu0 0.0
    %437 = vmatpush1.msra.mxu0 0.0
    %438 = vmatprep.subr.mxu0 0.0
    %439 = vmatpush1.msra.mxu0 0.0
    %440 = vmatprep.subr.mxu0 0.0
    %441 = vmatpush1.msra.mxu0 0.0
    %442 = vmatprep.subr.mxu0 0.0
    %443 = vmatpush1.msra.mxu0 0.0
    %444 = vmatprep.subr.mxu0 0.0
    %445 = vmatpush1.msra.mxu0 0.0
    %446 = vmatprep.subr.mxu0 0.0
    %447 = vmatpush1.msra.mxu0 0.0
    %448 = vmatprep.subr.mxu0 0.0
    %449 = vmatpush1.msra.mxu0 0.0
    %450 = vmatprep.subr.mxu0 0.0
    %451 = vmatpush1.msra.mxu0 0.0
    %452 = vmatprep.subr.mxu0 0.0
    %453 = vmatpush1.msra.mxu0 0.0
    %454 = vmatprep.subr.mxu0 0.0
    %455 = vmatpush1.msra.mxu0 0.0
    %456 = vmatprep.subr.mxu0 0.0
    %457 = vmatpush1.msra.mxu0 0.0
    %458 = vmatprep.mubr.f32.mxu0 0.0
    %459 = vmatmul.mubr.f32.gmra.mrb[0].mxu0 %v392
    %v460 = vpop.f32.mrb[0].mxu0
    %v461 = vadd.f32 0.0, %v460
    %v462 = vpop.f32.mrb[0].mxu0
    %463 = vdwg.mxu0
    %v464 = vadd.f32 %v388, %v461
    %v465 = vxor.u32 %v464, 2147483648
    %v466 = vmul.f32 %v465, 1.442695
    %v467 = vpow.pop %v466
    %v468 = vadd.f32 %v467, 1.0
    %v469 = vrcp.pop %v468
    %v470 = vmul.f32 1.0, %v469
    %v471 = vmul.f32 %v470, 2.0
    %v472 = vsub.f32 %v471, 1.0
    %v473 = vmul.f32 %v470, %v380
    %475 = vrot.lane.b32.xlu0 %v472, 64
    %v476 = vpop.permute.xlu0 %475
    %v478 = vmul.f32 %v470, %v476
    %480 = vrot.lane.b32.xlu0 %v478, 32
    %v481 = vpop.permute.xlu0 %480
    %v483 = vadd.f32 %v473, %v481
    %v484 = vtanh.pop %v483
    %486 = vrot.lane.b32.xlu0 %v484, 64
    %v487 = vpop.permute.xlu0 %486
    %v489 = vmul.f32 %v470, %v487
    %s490 = scalar_lea.vmem [#allocation2], 24
    %v491 = vld [vmem:[%s490] sm:$0xff]
    %493 = vrot.lane.b32.xlu0 %v489, 32
    %v494 = vpop.permute.xlu0 %493
    %v495 = vsel %vm184, %v494, 0
    %497 = vmatprep.subr.mxu0 0.0
    %498 = vmatpush1.msra.mxu0 %v179
    %499 = vmatprep.subr.mxu0 0.0
    %500 = vmatpush1.msra.mxu0 %v180
    %501 = vmatprep.subr.mxu0 0.0
    %502 = vmatpush1.msra.mxu0 %v181
    %503 = vmatprep.subr.mxu0 0.0
    %504 = vmatpush1.msra.mxu0 %v182
    %505 = vmatprep.subr.mxu0 0.0
    %506 = vmatpush1.msra.mxu0 0.0
    %507 = vmatprep.subr.mxu0 0.0
    %508 = vmatpush1.msra.mxu0 0.0
    %509 = vmatprep.subr.mxu0 0.0
    %510 = vmatpush1.msra.mxu0 0.0
    %511 = vmatprep.subr.mxu0 0.0
    %512 = vmatpush1.msra.mxu0 0.0
    %513 = vmatprep.subr.mxu0 0.0
    %514 = vmatpush1.msra.mxu0 0.0
    %515 = vmatprep.subr.mxu0 0.0
    %516 = vmatpush1.msra.mxu0 0.0
    %517 = vmatprep.subr.mxu0 0.0
    %518 = vmatpush1.msra.mxu0 0.0
    %519 = vmatprep.subr.mxu0 0.0
    %520 = vmatpush1.msra.mxu0 0.0
    %521 = vmatprep.subr.mxu0 0.0
    %522 = vmatpush1.msra.mxu0 0.0
    %523 = vmatprep.subr.mxu0 0.0
    %524 = vmatpush1.msra.mxu0 0.0
    %525 = vmatprep.subr.mxu0 0.0
    %526 = vmatpush1.msra.mxu0 0.0
    %527 = vmatprep.subr.mxu0 0.0
    %528 = vmatpush1.msra.mxu0 0.0
    %529 = vmatprep.subr.mxu0 0.0
    %530 = vmatpush1.msra.mxu0 0.0
    %531 = vmatprep.subr.mxu0 0.0
    %532 = vmatpush1.msra.mxu0 0.0
    %533 = vmatprep.subr.mxu0 0.0
    %534 = vmatpush1.msra.mxu0 0.0
    %535 = vmatprep.subr.mxu0 0.0
    %536 = vmatpush1.msra.mxu0 0.0
    %537 = vmatprep.subr.mxu0 0.0
    %538 = vmatpush1.msra.mxu0 0.0
    %539 = vmatprep.subr.mxu0 0.0
    %540 = vmatpush1.msra.mxu0 0.0
    %541 = vmatprep.subr.mxu0 0.0
    %542 = vmatpush1.msra.mxu0 0.0
    %543 = vmatprep.subr.mxu0 0.0
    %544 = vmatpush1.msra.mxu0 0.0
    %545 = vmatprep.subr.mxu0 0.0
    %546 = vmatpush1.msra.mxu0 0.0
    %547 = vmatprep.subr.mxu0 0.0
    %548 = vmatpush1.msra.mxu0 0.0
    %549 = vmatprep.subr.mxu0 0.0
    %550 = vmatpush1.msra.mxu0 0.0
    %551 = vmatprep.subr.mxu0 0.0
    %552 = vmatpush1.msra.mxu0 0.0
    %553 = vmatprep.subr.mxu0 0.0
    %554 = vmatpush1.msra.mxu0 0.0
    %555 = vmatprep.subr.mxu0 0.0
    %556 = vmatpush1.msra.mxu0 0.0
    %557 = vmatprep.subr.mxu0 0.0
    %558 = vmatpush1.msra.mxu0 0.0
    %559 = vmatprep.subr.mxu0 0.0
    %560 = vmatpush1.msra.mxu0 0.0
    %561 = vmatprep.mubr.f32.mxu0 0.0
    %562 = vmatmul.mubr.f32.gmra.mrb[0].mxu0 %v495
    %v563 = vpop.f32.mrb[0].mxu0
    %v564 = vadd.f32 0.0, %v563
    %v565 = vpop.f32.mrb[0].mxu0
    %566 = vdwg.mxu0
    %v567 = vadd.f32 %v491, %v564
    %v568 = vxor.u32 %v567, 2147483648
    %v569 = vmul.f32 %v568, 1.442695
    %v570 = vpow.pop %v569
    %v571 = vadd.f32 %v570, 1.0
    %v572 = vrcp.pop %v571
    %v573 = vmul.f32 1.0, %v572
    %v574 = vmul.f32 %v573, 2.0
    %v575 = vsub.f32 %v574, 1.0
    %v576 = vmul.f32 %v573, %v483
    %578 = vrot.lane.b32.xlu0 %v575, 64
    %v579 = vpop.permute.xlu0 %578
    %v581 = vmul.f32 %v573, %v579
    %583 = vrot.lane.b32.xlu0 %v581, 32
    %v584 = vpop.permute.xlu0 %583
    %v586 = vadd.f32 %v576, %v584
    %v587 = vtanh.pop %v586
    %589 = vrot.lane.b32.xlu0 %v587, 64
    %v590 = vpop.permute.xlu0 %589
    %v592 = vmul.f32 %v573, %v590
    %s593 = scalar_lea.vmem [#allocation2], 32
    %v594 = vld [vmem:[%s593] sm:$0xff]
    %596 = vrot.lane.b32.xlu0 %v592, 32
    %v597 = vpop.permute.xlu0 %596
    %v598 = vsel %vm184, %v597, 0
    %600 = vmatprep.subr.mxu0 0.0
    %601 = vmatpush1.msra.mxu0 %v179
    %602 = vmatprep.subr.mxu0 0.0
    %603 = vmatpush1.msra.mxu0 %v180
    %604 = vmatprep.subr.mxu0 0.0
    %605 = vmatpush1.msra.mxu0 %v181
    %606 = vmatprep.subr.mxu0 0.0
    %607 = vmatpush1.msra.mxu0 %v182
    %608 = vmatprep.subr.mxu0 0.0
    %609 = vmatpush1.msra.mxu0 0.0
    %610 = vmatprep.subr.mxu0 0.0
    %611 = vmatpush1.msra.mxu0 0.0
    %612 = vmatprep.subr.mxu0 0.0
    %613 = vmatpush1.msra.mxu0 0.0
    %614 = vmatprep.subr.mxu0 0.0
    %615 = vmatpush1.msra.mxu0 0.0
    %616 = vmatprep.subr.mxu0 0.0
    %617 = vmatpush1.msra.mxu0 0.0
    %618 = vmatprep.subr.mxu0 0.0
    %619 = vmatpush1.msra.mxu0 0.0
    %620 = vmatprep.subr.mxu0 0.0
    %621 = vmatpush1.msra.mxu0 0.0
    %622 = vmatprep.subr.mxu0 0.0
    %623 = vmatpush1.msra.mxu0 0.0
    %624 = vmatprep.subr.mxu0 0.0
    %625 = vmatpush1.msra.mxu0 0.0
    %626 = vmatprep.subr.mxu0 0.0
    %627 = vmatpush1.msra.mxu0 0.0
    %628 = vmatprep.subr.mxu0 0.0
    %629 = vmatpush1.msra.mxu0 0.0
    %630 = vmatprep.subr.mxu0 0.0
    %631 = vmatpush1.msra.mxu0 0.0
    %632 = vmatprep.subr.mxu0 0.0
    %633 = vmatpush1.msra.mxu0 0.0
    %634 = vmatprep.subr.mxu0 0.0
    %635 = vmatpush1.msra.mxu0 0.0
    %636 = vmatprep.subr.mxu0 0.0
    %637 = vmatpush1.msra.mxu0 0.0
    %638 = vmatprep.subr.mxu0 0.0
    %639 = vmatpush1.msra.mxu0 0.0
    %640 = vmatprep.subr.mxu0 0.0
    %641 = vmatpush1.msra.mxu0 0.0
    %642 = vmatprep.subr.mxu0 0.0
    %643 = vmatpush1.msra.mxu0 0.0
    %644 = vmatprep.subr.mxu0 0.0
    %645 = vmatpush1.msra.mxu0 0.0
    %646 = vmatprep.subr.mxu0 0.0
    %647 = vmatpush1.msra.mxu0 0.0
    %648 = vmatprep.subr.mxu0 0.0
    %649 = vmatpush1.msra.mxu0 0.0
    %650 = vmatprep.subr.mxu0 0.0
    %651 = vmatpush1.msra.mxu0 0.0
    %652 = vmatprep.subr.mxu0 0.0
    %653 = vmatpush1.msra.mxu0 0.0
    %654 = vmatprep.subr.mxu0 0.0
    %655 = vmatpush1.msra.mxu0 0.0
    %656 = vmatprep.subr.mxu0 0.0
    %657 = vmatpush1.msra.mxu0 0.0
    %658 = vmatprep.subr.mxu0 0.0
    %659 = vmatpush1.msra.mxu0 0.0
    %660 = vmatprep.subr.mxu0 0.0
    %661 = vmatpush1.msra.mxu0 0.0
    %662 = vmatprep.subr.mxu0 0.0
    %663 = vmatpush1.msra.mxu0 0.0
    %664 = vmatprep.mubr.f32.mxu0 0.0
    %665 = vmatmul.mubr.f32.gmra.mrb[0].mxu0 %v598
    %v666 = vpop.f32.mrb[0].mxu0
    %v667 = vadd.f32 0.0, %v666
    %v668 = vpop.f32.mrb[0].mxu0
    %669 = vdwg.mxu0
    %v670 = vadd.f32 %v594, %v667
    %v671 = vxor.u32 %v670, 2147483648
    %v672 = vmul.f32 %v671, 1.442695
    %v673 = vpow.pop %v672
    %v674 = vadd.f32 %v673, 1.0
    %v675 = vrcp.pop %v674
    %v676 = vmul.f32 1.0, %v675
    %v677 = vmul.f32 %v676, 2.0
    %v678 = vsub.f32 %v677, 1.0
    %v679 = vmul.f32 %v676, %v586
    %681 = vrot.lane.b32.xlu0 %v678, 64
    %v682 = vpop.permute.xlu0 %681
    %v684 = vmul.f32 %v676, %v682
    %686 = vrot.lane.b32.xlu0 %v684, 32
    %v687 = vpop.permute.xlu0 %686
    %v689 = vadd.f32 %v679, %v687
    %v690 = vtanh.pop %v689
    %692 = vrot.lane.b32.xlu0 %v690, 64
    %v693 = vpop.permute.xlu0 %692
    %v695 = vmul.f32 %v676, %v693
    %s696 = scalar_lea.vmem [#allocation2], 40
    %v697 = vld [vmem:[%s696] sm:$0xff]
    %699 = vrot.lane.b32.xlu0 %v695, 32
    %v700 = vpop.permute.xlu0 %699
    %v701 = vsel %vm184, %v700, 0
    %703 = vmatprep.subr.mxu0 0.0
    %704 = vmatpush1.msra.mxu0 %v179
    %705 = vmatprep.subr.mxu0 0.0
    %706 = vmatpush1.msra.mxu0 %v180
    %707 = vmatprep.subr.mxu0 0.0
    %708 = vmatpush1.msra.mxu0 %v181
    %709 = vmatprep.subr.mxu0 0.0
    %710 = vmatpush1.msra.mxu0 %v182
    %711 = vmatprep.subr.mxu0 0.0
    %712 = vmatpush1.msra.mxu0 0.0
    %713 = vmatprep.subr.mxu0 0.0
    %714 = vmatpush1.msra.mxu0 0.0
    %715 = vmatprep.subr.mxu0 0.0
    %716 = vmatpush1.msra.mxu0 0.0
    %717 = vmatprep.subr.mxu0 0.0
    %718 = vmatpush1.msra.mxu0 0.0
    %719 = vmatprep.subr.mxu0 0.0
    %720 = vmatpush1.msra.mxu0 0.0
    %721 = vmatprep.subr.mxu0 0.0
    %722 = vmatpush1.msra.mxu0 0.0
    %723 = vmatprep.subr.mxu0 0.0
    %724 = vmatpush1.msra.mxu0 0.0
    %725 = vmatprep.subr.mxu0 0.0
    %726 = vmatpush1.msra.mxu0 0.0
    %727 = vmatprep.subr.mxu0 0.0
    %728 = vmatpush1.msra.mxu0 0.0
    %729 = vmatprep.subr.mxu0 0.0
    %730 = vmatpush1.msra.mxu0 0.0
    %731 = vmatprep.subr.mxu0 0.0
    %732 = vmatpush1.msra.mxu0 0.0
    %733 = vmatprep.subr.mxu0 0.0
    %734 = vmatpush1.msra.mxu0 0.0
    %735 = vmatprep.subr.mxu0 0.0
    %736 = vmatpush1.msra.mxu0 0.0
    %737 = vmatprep.subr.mxu0 0.0
    %738 = vmatpush1.msra.mxu0 0.0
    %739 = vmatprep.subr.mxu0 0.0
    %740 = vmatpush1.msra.mxu0 0.0
    %741 = vmatprep.subr.mxu0 0.0
    %742 = vmatpush1.msra.mxu0 0.0
    %743 = vmatprep.subr.mxu0 0.0
    %744 = vmatpush1.msra.mxu0 0.0
    %745 = vmatprep.subr.mxu0 0.0
    %746 = vmatpush1.msra.mxu0 0.0
    %747 = vmatprep.subr.mxu0 0.0
    %748 = vmatpush1.msra.mxu0 0.0
    %749 = vmatprep.subr.mxu0 0.0
    %750 = vmatpush1.msra.mxu0 0.0
    %751 = vmatprep.subr.mxu0 0.0
    %752 = vmatpush1.msra.mxu0 0.0
    %753 = vmatprep.subr.mxu0 0.0
    %754 = vmatpush1.msra.mxu0 0.0
    %755 = vmatprep.subr.mxu0 0.0
    %756 = vmatpush1.msra.mxu0 0.0
    %757 = vmatprep.subr.mxu0 0.0
    %758 = vmatpush1.msra.mxu0 0.0
    %759 = vmatprep.subr.mxu0 0.0
    %760 = vmatpush1.msra.mxu0 0.0
    %761 = vmatprep.subr.mxu0 0.0
    %762 = vmatpush1.msra.mxu0 0.0
    %763 = vmatprep.subr.mxu0 0.0
    %764 = vmatpush1.msra.mxu0 0.0
    %765 = vmatprep.subr.mxu0 0.0
    %766 = vmatpush1.msra.mxu0 0.0
    %767 = vmatprep.mubr.f32.mxu0 0.0
    %768 = vmatmul.mubr.f32.gmra.mrb[0].mxu0 %v701
    %v769 = vpop.f32.mrb[0].mxu0
    %v770 = vadd.f32 0.0, %v769
    %v771 = vpop.f32.mrb[0].mxu0
    %772 = vdwg.mxu0
    %v773 = vadd.f32 %v697, %v770
    %v774 = vxor.u32 %v773, 2147483648
    %v775 = vmul.f32 %v774, 1.442695
    %v776 = vpow.pop %v775
    %v777 = vadd.f32 %v776, 1.0
    %v778 = vrcp.pop %v777
    %v779 = vmul.f32 1.0, %v778
    %v780 = vmul.f32 %v779, 2.0
    %v781 = vsub.f32 %v780, 1.0
    %v782 = vmul.f32 %v779, %v689
    %784 = vrot.lane.b32.xlu0 %v781, 64
    %v785 = vpop.permute.xlu0 %784
    %v787 = vmul.f32 %v779, %v785
    %789 = vrot.lane.b32.xlu0 %v787, 32
    %v790 = vpop.permute.xlu0 %789
    %v792 = vadd.f32 %v782, %v790
    %v793 = vtanh.pop %v792
    %795 = vrot.lane.b32.xlu0 %v793, 64
    %v796 = vpop.permute.xlu0 %795
    %v798 = vmul.f32 %v779, %v796
    %s799 = scalar_lea.vmem [#allocation2], 48
    %v800 = vld [vmem:[%s799] sm:$0xff]
    %802 = vrot.lane.b32.xlu0 %v798, 32
    %v803 = vpop.permute.xlu0 %802
    %v804 = vsel %vm184, %v803, 0
    %806 = vmatprep.subr.mxu0 0.0
    %807 = vmatpush1.msra.mxu0 %v179
    %808 = vmatprep.subr.mxu0 0.0
    %809 = vmatpush1.msra.mxu0 %v180
    %810 = vmatprep.subr.mxu0 0.0
    %811 = vmatpush1.msra.mxu0 %v181
    %812 = vmatprep.subr.mxu0 0.0
    %813 = vmatpush1.msra.mxu0 %v182
    %814 = vmatprep.subr.mxu0 0.0
    %815 = vmatpush1.msra.mxu0 0.0
    %816 = vmatprep.subr.mxu0 0.0
    %817 = vmatpush1.msra.mxu0 0.0
    %818 = vmatprep.subr.mxu0 0.0
    %819 = vmatpush1.msra.mxu0 0.0
    %820 = vmatprep.subr.mxu0 0.0
    %821 = vmatpush1.msra.mxu0 0.0
    %822 = vmatprep.subr.mxu0 0.0
    %823 = vmatpush1.msra.mxu0 0.0
    %824 = vmatprep.subr.mxu0 0.0
    %825 = vmatpush1.msra.mxu0 0.0
    %826 = vmatprep.subr.mxu0 0.0
    %827 = vmatpush1.msra.mxu0 0.0
    %828 = vmatprep.subr.mxu0 0.0
    %829 = vmatpush1.msra.mxu0 0.0
    %830 = vmatprep.subr.mxu0 0.0
    %831 = vmatpush1.msra.mxu0 0.0
    %832 = vmatprep.subr.mxu0 0.0
    %833 = vmatpush1.msra.mxu0 0.0
    %834 = vmatprep.subr.mxu0 0.0
    %835 = vmatpush1.msra.mxu0 0.0
    %836 = vmatprep.subr.mxu0 0.0
    %837 = vmatpush1.msra.mxu0 0.0
    %838 = vmatprep.subr.mxu0 0.0
    %839 = vmatpush1.msra.mxu0 0.0
    %840 = vmatprep.subr.mxu0 0.0
    %841 = vmatpush1.msra.mxu0 0.0
    %842 = vmatprep.subr.mxu0 0.0
    %843 = vmatpush1.msra.mxu0 0.0
    %844 = vmatprep.subr.mxu0 0.0
    %845 = vmatpush1.msra.mxu0 0.0
    %846 = vmatprep.subr.mxu0 0.0
    %847 = vmatpush1.msra.mxu0 0.0
    %848 = vmatprep.subr.mxu0 0.0
    %849 = vmatpush1.msra.mxu0 0.0
    %850 = vmatprep.subr.mxu0 0.0
    %851 = vmatpush1.msra.mxu0 0.0
    %852 = vmatprep.subr.mxu0 0.0
    %853 = vmatpush1.msra.mxu0 0.0
    %854 = vmatprep.subr.mxu0 0.0
    %855 = vmatpush1.msra.mxu0 0.0
    %856 = vmatprep.subr.mxu0 0.0
    %857 = vmatpush1.msra.mxu0 0.0
    %858 = vmatprep.subr.mxu0 0.0
    %859 = vmatpush1.msra.mxu0 0.0
    %860 = vmatprep.subr.mxu0 0.0
    %861 = vmatpush1.msra.mxu0 0.0
    %862 = vmatprep.subr.mxu0 0.0
    %863 = vmatpush1.msra.mxu0 0.0
    %864 = vmatprep.subr.mxu0 0.0
    %865 = vmatpush1.msra.mxu0 0.0
    %866 = vmatprep.subr.mxu0 0.0
    %867 = vmatpush1.msra.mxu0 0.0
    %868 = vmatprep.subr.mxu0 0.0
    %869 = vmatpush1.msra.mxu0 0.0
    %870 = vmatprep.mubr.f32.mxu0 0.0
    %871 = vmatmul.mubr.f32.gmra.mrb[0].mxu0 %v804
    %v872 = vpop.f32.mrb[0].mxu0
    %v873 = vadd.f32 0.0, %v872
    %v874 = vpop.f32.mrb[0].mxu0
    %875 = vdwg.mxu0
    %v876 = vadd.f32 %v800, %v873
    %v877 = vxor.u32 %v876, 2147483648
    %v878 = vmul.f32 %v877, 1.442695
    %v879 = vpow.pop %v878
    %v880 = vadd.f32 %v879, 1.0
    %v881 = vrcp.pop %v880
    %v882 = vmul.f32 1.0, %v881
    %v883 = vmul.f32 %v882, 2.0
    %v884 = vsub.f32 %v883, 1.0
    %v885 = vmul.f32 %v882, %v792
    %887 = vrot.lane.b32.xlu0 %v884, 64
    %v888 = vpop.permute.xlu0 %887
    %v890 = vmul.f32 %v882, %v888
    %892 = vrot.lane.b32.xlu0 %v890, 32
    %v893 = vpop.permute.xlu0 %892
    %v895 = vadd.f32 %v885, %v893
    %v896 = vtanh.pop %v895
    %898 = vrot.lane.b32.xlu0 %v896, 64
    %v899 = vpop.permute.xlu0 %898
    %v901 = vmul.f32 %v882, %v899
    %s902 = scalar_lea.vmem [#allocation2], 56
    %v903 = vld [vmem:[%s902] sm:$0xff]
    %905 = vrot.lane.b32.xlu0 %v901, 32
    %v906 = vpop.permute.xlu0 %905
    %v907 = vsel %vm184, %v906, 0
    %909 = vmatprep.subr.mxu0 0.0
    %910 = vmatpush1.msra.mxu0 %v179
    %911 = vmatprep.subr.mxu0 0.0
    %912 = vmatpush1.msra.mxu0 %v180
    %913 = vmatprep.subr.mxu0 0.0
    %914 = vmatpush1.msra.mxu0 %v181
    %915 = vmatprep.subr.mxu0 0.0
    %916 = vmatpush1.msra.mxu0 %v182
    %917 = vmatprep.subr.mxu0 0.0
    %918 = vmatpush1.msra.mxu0 0.0
    %919 = vmatprep.subr.mxu0 0.0
    %920 = vmatpush1.msra.mxu0 0.0
    %921 = vmatprep.subr.mxu0 0.0
    %922 = vmatpush1.msra.mxu0 0.0
    %923 = vmatprep.subr.mxu0 0.0
    %924 = vmatpush1.msra.mxu0 0.0
    %925 = vmatprep.subr.mxu0 0.0
    %926 = vmatpush1.msra.mxu0 0.0
    %927 = vmatprep.subr.mxu0 0.0
    %928 = vmatpush1.msra.mxu0 0.0
    %929 = vmatprep.subr.mxu0 0.0
    %930 = vmatpush1.msra.mxu0 0.0
    %931 = vmatprep.subr.mxu0 0.0
    %932 = vmatpush1.msra.mxu0 0.0
    %933 = vmatprep.subr.mxu0 0.0
    %934 = vmatpush1.msra.mxu0 0.0
    %935 = vmatprep.subr.mxu0 0.0
    %936 = vmatpush1.msra.mxu0 0.0
    %937 = vmatprep.subr.mxu0 0.0
    %938 = vmatpush1.msra.mxu0 0.0
    %939 = vmatprep.subr.mxu0 0.0
    %940 = vmatpush1.msra.mxu0 0.0
    %941 = vmatprep.subr.mxu0 0.0
    %942 = vmatpush1.msra.mxu0 0.0
    %943 = vmatprep.subr.mxu0 0.0
    %944 = vmatpush1.msra.mxu0 0.0
    %945 = vmatprep.subr.mxu0 0.0
    %946 = vmatpush1.msra.mxu0 0.0
    %947 = vmatprep.subr.mxu0 0.0
    %948 = vmatpush1.msra.mxu0 0.0
    %949 = vmatprep.subr.mxu0 0.0
    %950 = vmatpush1.msra.mxu0 0.0
    %951 = vmatprep.subr.mxu0 0.0
    %952 = vmatpush1.msra.mxu0 0.0
    %953 = vmatprep.subr.mxu0 0.0
    %954 = vmatpush1.msra.mxu0 0.0
    %955 = vmatprep.subr.mxu0 0.0
    %956 = vmatpush1.msra.mxu0 0.0
    %957 = vmatprep.subr.mxu0 0.0
    %958 = vmatpush1.msra.mxu0 0.0
    %959 = vmatprep.subr.mxu0 0.0
    %960 = vmatpush1.msra.mxu0 0.0
    %961 = vmatprep.subr.mxu0 0.0
    %962 = vmatpush1.msra.mxu0 0.0
    %963 = vmatprep.subr.mxu0 0.0
    %964 = vmatpush1.msra.mxu0 0.0
    %965 = vmatprep.subr.mxu0 0.0
    %966 = vmatpush1.msra.mxu0 0.0
    %967 = vmatprep.subr.mxu0 0.0
    %968 = vmatpush1.msra.mxu0 0.0
    %969 = vmatprep.subr.mxu0 0.0
    %970 = vmatpush1.msra.mxu0 0.0
    %971 = vmatprep.subr.mxu0 0.0
    %972 = vmatpush1.msra.mxu0 0.0
    %973 = vmatprep.mubr.f32.mxu0 0.0
    %974 = vmatmul.mubr.f32.gmra.mrb[0].mxu0 %v907
    %v975 = vpop.f32.mrb[0].mxu0
    %v976 = vadd.f32 0.0, %v975
    %v977 = vpop.f32.mrb[0].mxu0
    %978 = vdwg.mxu0
    %v979 = vadd.f32 %v903, %v976
    %v980 = vxor.u32 %v979, 2147483648
    %v981 = vmul.f32 %v980, 1.442695
    %v982 = vpow.pop %v981
    %v983 = vadd.f32 %v982, 1.0
    %v984 = vrcp.pop %v983
    %v985 = vmul.f32 1.0, %v984
    %v986 = vmul.f32 %v985, 2.0
    %v987 = vsub.f32 %v986, 1.0
    %v988 = vmul.f32 %v985, %v895
    %990 = vrot.lane.b32.xlu0 %v987, 64
    %v991 = vpop.permute.xlu0 %990
    %v993 = vmul.f32 %v985, %v991
    %995 = vrot.lane.b32.xlu0 %v993, 32
    %v996 = vpop.permute.xlu0 %995
    %v998 = vadd.f32 %v988, %v996
    %v999 = vtanh.pop %v998
    %1001 = vrot.lane.b32.xlu0 %v999, 64
    %v1002 = vpop.permute.xlu0 %1001
    %v1004 = vmul.f32 %v985, %v1002
    %v1005 = vld [vmem:[%s4] sm:$0xff]
    %v1006 = vld [vmem:[%s4 + $0x8] sm:$0xff]
    %v1007 = vld [vmem:[%s4 + $0x10] sm:$0xff]
    %v1008 = vld [vmem:[%s4 + $0x18] sm:$0xff]
    %v1009 = vld [vmem:[%s5] sm:$0x1]
    %v1011 = vlaneseq
    %v1012 = vshrl.u32 %v1011, 7
    %v1013 = vsub.s32 0, %v1012
    %v1014 = vrot.slane %v1009, %v1013
    %1017 = vrot.lane.b32.xlu0 %v1004, 32
    %v1018 = vpop.permute.xlu0 %1017
    %v1019 = vsel %vm184, %v1018, 0
    %1021 = vmatprep.subr.mxu0 0.0
    %1022 = vmatpush1.msra.mxu0 %v1005
    %1023 = vmatprep.subr.mxu0 0.0
    %1024 = vmatpush1.msra.mxu0 %v1006
    %1025 = vmatprep.subr.mxu0 0.0
    %1026 = vmatpush1.msra.mxu0 %v1007
    %1027 = vmatprep.subr.mxu0 0.0
    %1028 = vmatpush1.msra.mxu0 %v1008
    %1029 = vmatprep.subr.mxu0 0.0
    %1030 = vmatpush1.msra.mxu0 0.0
    %1031 = vmatprep.subr.mxu0 0.0
    %1032 = vmatpush1.msra.mxu0 0.0
    %1033 = vmatprep.subr.mxu0 0.0
    %1034 = vmatpush1.msra.mxu0 0.0
    %1035 = vmatprep.subr.mxu0 0.0
    %1036 = vmatpush1.msra.mxu0 0.0
    %1037 = vmatprep.subr.mxu0 0.0
    %1038 = vmatpush1.msra.mxu0 0.0
    %1039 = vmatprep.subr.mxu0 0.0
    %1040 = vmatpush1.msra.mxu0 0.0
    %1041 = vmatprep.subr.mxu0 0.0
    %1042 = vmatpush1.msra.mxu0 0.0
    %1043 = vmatprep.subr.mxu0 0.0
    %1044 = vmatpush1.msra.mxu0 0.0
    %1045 = vmatprep.subr.mxu0 0.0
    %1046 = vmatpush1.msra.mxu0 0.0
    %1047 = vmatprep.subr.mxu0 0.0
    %1048 = vmatpush1.msra.mxu0 0.0
    %1049 = vmatprep.subr.mxu0 0.0
    %1050 = vmatpush1.msra.mxu0 0.0
    %1051 = vmatprep.subr.mxu0 0.0
    %1052 = vmatpush1.msra.mxu0 0.0
    %1053 = vmatprep.subr.mxu0 0.0
    %1054 = vmatpush1.msra.mxu0 0.0
    %1055 = vmatprep.subr.mxu0 0.0
    %1056 = vmatpush1.msra.mxu0 0.0
    %1057 = vmatprep.subr.mxu0 0.0
    %1058 = vmatpush1.msra.mxu0 0.0
    %1059 = vmatprep.subr.mxu0 0.0
    %1060 = vmatpush1.msra.mxu0 0.0
    %1061 = vmatprep.subr.mxu0 0.0
    %1062 = vmatpush1.msra.mxu0 0.0
    %1063 = vmatprep.subr.mxu0 0.0
    %1064 = vmatpush1.msra.mxu0 0.0
    %1065 = vmatprep.subr.mxu0 0.0
    %1066 = vmatpush1.msra.mxu0 0.0
    %1067 = vmatprep.subr.mxu0 0.0
    %1068 = vmatpush1.msra.mxu0 0.0
    %1069 = vmatprep.subr.mxu0 0.0
    %1070 = vmatpush1.msra.mxu0 0.0
    %1071 = vmatprep.subr.mxu0 0.0
    %1072 = vmatpush1.msra.mxu0 0.0
    %1073 = vmatprep.subr.mxu0 0.0
    %1074 = vmatpush1.msra.mxu0 0.0
    %1075 = vmatprep.subr.mxu0 0.0
    %1076 = vmatpush1.msra.mxu0 0.0
    %1077 = vmatprep.subr.mxu0 0.0
    %1078 = vmatpush1.msra.mxu0 0.0
    %1079 = vmatprep.subr.mxu0 0.0
    %1080 = vmatpush1.msra.mxu0 0.0
    %1081 = vmatprep.subr.mxu0 0.0
    %1082 = vmatpush1.msra.mxu0 0.0
    %1083 = vmatprep.subr.mxu0 0.0
    %1084 = vmatpush1.msra.mxu0 0.0
    %1085 = vmatprep.mubr.f32.mxu0 0.0
    %1086 = vmatmul.mubr.f32.gmra.mrb[0].mxu0 %v1019
    %v1087 = vpop.f32.mrb[0].mxu0
    %v1088 = vadd.f32 %v1014, %v1087
    %v1089 = vpop.f32.mrb[0].mxu0
    %1090 = vdwg.mxu0
    %1091 = vst [vmem:[#allocation3] sm:$0xff] %v1088
    // Predicated region
    $region26: #{tpu_custom_call.1} parent=1 // pred_check
      _
    $region27: #{tpu_custom_call.1} parent=1 // pred_check_branch
      %1093 = sbr.rel (0) target = $region29
    $region28: #{tpu_custom_call.1} parent=1 // pred_region
      %s1095 = ssub.s32 128, 128
      %1096 = vsyncadd [#allocation4], %s1095
      %s1098 = sshll.u32 [#allocation3], 4
      %s1099 = int_to_ptr.vmem [resolvable:$true] %s1098
      %1101 = dma.vmem_to_hbm [thread:$0]  %s1099, 128, %s6, [#allocation4]
    $region29: #{tpu_custom_call.1} parent=1 // pred_fallthru
      _
    // Predicated region
    $region30: #{tpu_custom_call.1} parent=1 // pred_check
      _
    $region31: #{tpu_custom_call.1} parent=1 // pred_check_branch
      %1103 = sbr.rel (0) target = $region33
    $region32: #{tpu_custom_call.1} parent=1 // pred_region
      %1104 = dma.done [#allocation4], 128
    $region33: #{tpu_custom_call.1} parent=1 // pred_fallthru
      _
    %1105 = vsyncpa [#allocation4], 1

</llo_original>
